<compile_context>
chip_gen: v7x
topology: tpu7x:2x2x1
jax: 0.10.0
libtpu: 0.0.40
codegen_flags: <defaults>
</compile_context>

<pallas_src>
import functools
import math

import jax
import jax.numpy as jnp
from jax import lax
from jax.experimental import pallas as pl
from jax.experimental.pallas import tpu as pltpu


def _rmsnorm_kernel(x_ref, w_ref, o_ref, *, eps, inv_dim, x_dtype):
    """Standard path: one logical row per sublane row, reduce over lanes.

    The feature axis may be zero-padded to a multiple of 128, so the statistic
    is sum(x*x) * (1/true_dim) rather than a mean over the padded width.
    """
    x = x_ref[...].astype(jnp.float32)                       # (tm, W)
    ms = jnp.sum(x * x, axis=-1, keepdims=True) * inv_dim    # (tm, 1)
    normed = (x * lax.rsqrt(ms + eps)).astype(x_dtype)       # matches .type_as(x)
    o_ref[...] = normed.astype(o_ref.dtype) * w_ref[...]     # weight already out dtype


def _rmsnorm_packed_kernel(x_ref, w_ref, seg_ref, o_ref, *, eps, inv_dim, x_dtype):
    """Lane-packed path for dim < 128: each kernel row holds k = 128 // dim
    original rows concatenated along lanes.  The per-segment sum of squares is
    computed with a block-diagonal MXU matmul against a constant seg matrix
    (hoisted to the wrapper, resident in VMEM) so loads/stores stay lane-dense."""
    x = x_ref[...].astype(jnp.float32)                       # (tm, 128)
    seg_sum = jnp.dot(x * x, seg_ref[...],
                      preferred_element_type=jnp.float32)    # (tm, 128)
    normed = (x * lax.rsqrt(seg_sum * inv_dim + eps)).astype(x_dtype)
    o_ref[...] = normed.astype(o_ref.dtype) * w_ref[...]


def _vmem_capacity_bytes():
    """Physical VMEM per core; conservative fallback = 64 MiB (v7x)."""
    try:
        info = pltpu.get_tpu_info()
        cap = getattr(info, "vmem_capacity_bytes", None)
        if cap:
            return int(cap)
    except Exception:
        pass
    return 64 << 20


def _round_up(v, m):
    return ((v + m - 1) // m) * m


def _choose_row_tile(rows, width, x_itemsize, out_itemsize, vmem_cap,
                     min_steps=8):
    """Sublane-aligned row tile: ~4 MiB input tiles, working set under ~half of
    physical VMEM, and enough grid steps that both v7x TensorCores pipeline."""
    sublane = {4: 8, 2: 16, 1: 32}.get(x_itemsize, 8)
    if rows <= sublane:
        return rows                                   # full extent: always legal

    # Working set per tile row: 2x input + 2x output (double-buffered) plus
    # ~3 f32-wide intermediates (upcast, squares, normalized values).
    per_row_ws = width * (2 * x_itemsize + 2 * out_itemsize + 3 * 4)
    ws_budget = max(vmem_cap // 2, 8 << 20)
    tile_ws = max(sublane, ws_budget // max(1, per_row_ws))

    target_bytes = 4 << 20                            # ~4 MiB input per grid step
    tile_tgt = max(sublane, target_bytes // max(1, width * x_itemsize))

    tile = min(rows, tile_ws, tile_tgt)
    tile = max(sublane, (tile // sublane) * sublane)

    # Target >= min_steps total grid steps (>= 2-4 per v7x TensorCore) without
    # shrinking per-step input below ~512 KiB.
    min_useful = max(sublane, (512 << 10) // max(1, width * x_itemsize))
    min_useful = max(sublane, (min_useful // sublane) * sublane)
    steps_tile = max(min_useful, _round_up(pl.cdiv(rows, min_steps), sublane))
    tile = min(tile, steps_tile)

    # Always guarantee at least two steps when the row count allows it.
    if tile >= rows:
        half = (((rows + 1) // 2) // sublane) * sublane
        if sublane <= half < rows:
            tile = half
    return max(1, min(tile, rows))


def rmsnorm_pallas(x, weight, eps=1e-6, *, row_tile=None):
    """RMSNorm over the last axis of `x`, scaled by `weight` (shape (dim,))."""
    orig_shape = x.shape
    dim = orig_shape[-1]
    assert weight.shape == (dim,)

    x_dtype = jnp.dtype(x.dtype)
    out_dtype = jnp.promote_types(x.dtype, weight.dtype)   # PyTorch promotion
    x_item = x_dtype.itemsize
    out_item = jnp.dtype(out_dtype).itemsize

    rows = int(math.prod(orig_shape[:-1])) if len(orig_shape) > 1 else 1
    x2d = x.reshape(rows, dim)

    # ---- lane packing / feature padding to keep the kernel width a multiple of 128
    pack = 1
    if dim < 128 and 128 % dim == 0:
        pack = 128 // dim

    if pack > 1:
        pad_rows = (-rows) % pack
        if pad_rows:
            x2d = jnp.concatenate(
                [x2d, jnp.zeros((pad_rows, dim), x.dtype)], axis=0)
        kern_rows = (rows + pad_rows) // pack
        width = dim * pack                              # == 128
        x_kern = x2d.reshape(kern_rows, width)
        pad_dim = 0
    else:
        pad_dim = (-dim) % 128
        width = dim + pad_dim
        if pad_dim:
            x2d = jnp.concatenate(
                [x2d, jnp.zeros((rows, pad_dim), x.dtype)], axis=1)
        kern_rows = rows
        x_kern = x2d

    # Weight pre-cast to the promoted output dtype (halves the one-time DMA for
    # f32 weight + bf16 x and removes the per-step astype).
    w = weight.astype(out_dtype)
    if pack > 1:
        w = jnp.tile(w, (pack,))
    elif pad_dim:
        w = jnp.concatenate([w, jnp.zeros((pad_dim,), out_dtype)])
    w2d = w.reshape(1, width)

    vmem_cap = _vmem_capacity_bytes()
    if row_tile is None:
        row_tile = _choose_row_tile(kern_rows, width, x_item, out_item, vmem_cap)
    row_tile = max(1, min(row_tile, kern_rows))
    grid = (pl.cdiv(kern_rows, row_tile),)

    inv_dim = 1.0 / float(dim)
    inputs = [x_kern, w2d]
    in_specs = [
        pl.BlockSpec((row_tile, width), lambda i: (i, 0)),
        pl.BlockSpec((1, width), lambda i: (0, 0)),      # resident weight block
    ]
    if pack > 1:
        # Block-diagonal segment matrix, built once, resident across all steps.
        lanes = jnp.arange(width, dtype=jnp.int32) // dim
        seg = (lanes[:, None] == lanes[None, :]).astype(jnp.float32)  # (128, 128)
        inputs.append(seg)
        in_specs.append(pl.BlockSpec((width, width), lambda i: (0, 0)))
        kernel = functools.partial(_rmsnorm_packed_kernel, eps=eps,
                                   inv_dim=inv_dim, x_dtype=x_dtype)
    else:
        kernel = functools.partial(_rmsnorm_kernel, eps=eps,
                                   inv_dim=inv_dim, x_dtype=x_dtype)

    # ---- VMEM budget: double-buffered in/out tiles + f32 upcast intermediates
    #      + resident weight (and seg for the packed path).
    in_tile_b = row_tile * width * x_item
    out_tile_b = row_tile * width * out_item
    f32_tile_b = row_tile * width * 4
    vmem_needed = (2 * in_tile_b + 2 * out_tile_b + 3 * f32_tile_b
                   + 2 * width * out_item
                   + (2 * width * width * 4 if pack > 1 else 0))
    vmem_limit = int(min(max(vmem_needed * 5 // 4, 16 << 20),
                         max(vmem_cap // 2, 16 << 20)))

    flops = 3 * rows * dim
    if pack > 1:
        flops += 2 * kern_rows * width * width          # seg matmul
    cost = pl.CostEstimate(
        flops=int(flops),
        transcendentals=int(rows),
        bytes_accessed=int(rows * dim * (x_item + out_item)
                           + width * out_item
                           + (width * width * 4 if pack > 1 else 0)),
    )

    out2d = pl.pallas_call(
        kernel,
        out_shape=jax.ShapeDtypeStruct((kern_rows, width), out_dtype),
        grid_spec=pltpu.PrefetchScalarGridSpec(
            num_scalar_prefetch=0,
            grid=grid,
            in_specs=in_specs,
            out_specs=pl.BlockSpec((row_tile, width), lambda i: (i, 0)),
        ),
        compiler_params=pltpu.CompilerParams(
            dimension_semantics=("parallel",),
            vmem_limit_bytes=vmem_limit,
        ),
        cost_estimate=cost,
    )(*inputs)

    if pack > 1:
        out_rows = out2d.reshape(kern_rows * pack, dim)[:rows]
    elif pad_dim:
        out_rows = out2d[:, :dim]
    else:
        out_rows = out2d
    return out_rows.reshape(orig_shape)


def rmsnorm_ref(x, weight, eps=1e-6):
    """Pure-JAX reference mirroring the PyTorch module exactly."""
    xf = x.astype(jnp.float32)
    normed = xf * lax.rsqrt(jnp.mean(xf * xf, axis=-1, keepdims=True) + eps)
    return normed.astype(x.dtype) * weight      # promotes like `output * self.weight`


if __name__ == "__main__":
    key = jax.random.PRNGKey(0)
    batch, seq, dim = 2, 8, 32

    # 1) Lane-packed path (dim = 32 < 128), matches the module's tiny config.
    x = jax.random.normal(key, (batch, seq, dim), dtype=jnp.float32)
    weight = jnp.ones((dim,), dtype=jnp.float32)     # nn.Parameter(torch.ones(dim))
    out = jax.block_until_ready(rmsnorm_pallas(x, weight, eps=1e-6))
    assert out.shape == x.shape and out.dtype == x.dtype
    assert jnp.allclose(out, rmsnorm_ref(x, weight, eps=1e-6), atol=1e-5, rtol=1e-5)

    # 2) Standard lane-aligned path (dim = 256), multi-step grid.
    x2 = jax.random.normal(jax.random.PRNGKey(1), (4, 16, 256), dtype=jnp.float32)
    w2 = jnp.ones((256,), dtype=jnp.float32)
    out2 = jax.block_until_ready(rmsnorm_pallas(x2, w2))
    assert jnp.allclose(out2, rmsnorm_ref(x2, w2), atol=1e-5, rtol=1e-5)

    # 3) Non-multiple-of-128 dim (feature padding) + ragged row count.
    x3 = jax.random.normal(jax.random.PRNGKey(2), (3, 5, 200), dtype=jnp.float32)
    w3 = jax.random.normal(jax.random.PRNGKey(3), (200,), dtype=jnp.float32)
    out3 = jax.block_until_ready(rmsnorm_pallas(x3, w3))
    assert jnp.allclose(out3, rmsnorm_ref(x3, w3), atol=1e-5, rtol=1e-5)

    # 4) Lane-packed path with rows not divisible by the pack factor.
    x4 = jax.random.normal(jax.random.PRNGKey(4), (3, 5, 32), dtype=jnp.float32)
    w4 = jax.random.normal(jax.random.PRNGKey(5), (32,), dtype=jnp.float32)
    out4 = jax.block_until_ready(rmsnorm_pallas(x4, w4))
    assert jnp.allclose(out4, rmsnorm_ref(x4, w4), atol=1e-5, rtol=1e-5)

    # 5) Mixed dtypes: bf16 activations with f32 weight (PyTorch promotes to f32).
    x5 = jax.random.normal(jax.random.PRNGKey(6), (2, 16, 64), dtype=jnp.bfloat16)
    w5 = jax.random.normal(jax.random.PRNGKey(7), (64,), dtype=jnp.float32)
    out5 = jax.block_until_ready(rmsnorm_pallas(x5, w5))
    assert out5.dtype == jnp.float32
    assert jnp.allclose(out5, rmsnorm_ref(x5, w5), atol=2e-2, rtol=2e-2)

    print("KERNEL_OK")
</pallas_src>

<mosaic_0001>
module attributes {stable_mosaic.version = 11 : i64} {
  func.func @_rmsnorm_packed_kernel(%arg0: i32, %arg1: memref<4x128xf32, #tpu.memory_space<vmem>>, %arg2: memref<1x128xf32, #tpu.memory_space<vmem>>, %arg3: memref<128x128xf32, #tpu.memory_space<vmem>>, %arg4: memref<4x128xf32, #tpu.memory_space<vmem>>) attributes {dimension_semantics = [#tpu.dimension_semantics<parallel>], iteration_bounds = array<i64: 1>, scalar_prefetch = 0 : i64, scratch_operands = 0 : i64, tpu.core_type = #tpu.core_type<tc>, window_params = [{transform_indices = @transform_0, window_bounds = array<i64: 4, 128>}, {pipeline_mode = #tpu.pipeline_mode<synchronous>, transform_indices = @transform_1, window_bounds = array<i64: 1, 128>}, {pipeline_mode = #tpu.pipeline_mode<synchronous>, transform_indices = @transform_2, window_bounds = array<i64: 128, 128>}, {transform_indices = @transform_3, window_bounds = array<i64: 4, 128>}]} {
    %c0 = arith.constant 0 : index
    %c0_0 = arith.constant 0 : index
    %0 = vector.load %arg1[%c0, %c0_0] : memref<4x128xf32, #tpu.memory_space<vmem>>, vector<4x128xf32>
    %1 = arith.mulf %0, %0 : vector<4x128xf32>
    %c0_1 = arith.constant 0 : index
    %c0_2 = arith.constant 0 : index
    %2 = vector.load %arg3[%c0_1, %c0_2] : memref<128x128xf32, #tpu.memory_space<vmem>>, vector<128x128xf32>
    %cst = arith.constant dense<0.000000e+00> : vector<4x128xf32>
    %3 = tpu.matmul %1, %2, %cst {dimension_numbers = #tpu.dot_dimension_numbers<[1], [0], [0], [1], [0, 0, 1, 1], [], []>} : vector<4x128xf32>, vector<128x128xf32>, vector<4x128xf32> -> vector<4x128xf32>
    %cst_3 = arith.constant 3.125000e-02 : f32
    %4 = vector.broadcast %cst_3 : f32 to vector<4x128xf32>
    %5 = arith.mulf %3, %4 : vector<4x128xf32>
    %cst_4 = arith.constant 9.99999997E-7 : f32
    %6 = vector.broadcast %cst_4 : f32 to vector<4x128xf32>
    %7 = arith.addf %5, %6 : vector<4x128xf32>
    %8 = math.rsqrt %7 : vector<4x128xf32>
    %9 = arith.mulf %0, %8 : vector<4x128xf32>
    %c0_5 = arith.constant 0 : index
    %c0_6 = arith.constant 0 : index
    %10 = vector.load %arg2[%c0_5, %c0_6] : memref<1x128xf32, #tpu.memory_space<vmem>>, vector<1x128xf32>
    %11 = vector.broadcast %10 : vector<1x128xf32> to vector<4x128xf32>
    %12 = arith.mulf %9, %11 : vector<4x128xf32>
    %c0_7 = arith.constant 0 : index
    %c0_8 = arith.constant 0 : index
    %13 = vector.load %arg4[%c0_7, %c0_8] : memref<4x128xf32, #tpu.memory_space<vmem>>, vector<4x128xf32>
    tpu.vector_store %arg4[%c0_7, %c0_8], %12 {strides = array<i32>} : memref<4x128xf32, #tpu.memory_space<vmem>>, vector<4x128xf32>,
    return
  }
  func.func @transform_0(%arg0: i32) -> (i32, i32) {
    %c0_i32 = arith.constant 0 : i32
    %c0_i32_0 = arith.constant 0 : i32
    return %arg0, %c0_i32 : i32, i32
  }
  func.func @transform_1(%arg0: i32) -> (i32, i32) {
    %c0_i32 = arith.constant 0 : i32
    %c0_i32_0 = arith.constant 0 : i32
    %c0_i32_1 = arith.constant 0 : i32
    return %c0_i32, %c0_i32_0 : i32, i32
  }
  func.func @transform_2(%arg0: i32) -> (i32, i32) {
    %c0_i32 = arith.constant 0 : i32
    %c0_i32_0 = arith.constant 0 : i32
    %c0_i32_1 = arith.constant 0 : i32
    return %c0_i32, %c0_i32_0 : i32, i32
  }
  func.func @transform_3(%arg0: i32) -> (i32, i32) {
    %c0_i32 = arith.constant 0 : i32
    %c0_i32_0 = arith.constant 0 : i32
    return %arg0, %c0_i32 : i32, i32
  }
}

</mosaic_0001>

<llo_original>
// kernel: tpu_custom_call.1
$region0: #{tpu_custom_call.1}
  #allocation0 [shape = 'u32[]', space=smem, size = 0x4, offset = 0x4, fixed_abs, tag = 'smem constant byte address 0x4 - core index']
  #allocation1 [shape = 'u32[144,128]{1,0:T(1,128)}', space=vmem, size = 0x12000, scoped, tag = 'internal scratch']
  %s0 = inlined_call_operand.hbm [shape: f32[4,128], index: 0, kind: input, shape index: {}]
  %s1 = inlined_call_operand.vmem [shape: f32[1,128], index: 1, kind: input, shape index: {}]
  %s2 = inlined_call_operand.hbm [shape: f32[128,128], index: 2, kind: input, shape index: {}]
  %s3 = inlined_call_operand.hbm [shape: f32[4,128], index: 3, kind: output, shape index: {}]
  %s4 = sld [smem:[#allocation0]]
  $region30: #{tpu_custom_call.1} parent=0
    _
  %s6 = ssub.s32 1, %s4
  %s7 = scalar_select 0, %s6, %s4
  $region1: #{tpu_custom_call.1} parent=0
    #allocation2 [shape = 'u8[2048]{0}', space=vmem, size = 0x800, scoped, tag = 'input window, operand 0, single buffered']
    #allocation3 [shape = 's32[1]{0}', space=sflag, size = 0x4, scoped, tag = 'scoped memory for tpu_custom_call.1']
    #allocation4 [shape = 's32[1]{0}', space=sflag, size = 0x4, scoped, tag = 'scoped memory for tpu_custom_call.1']
    #allocation5 [shape = 'u8[65536]{0}', space=vmem, size = 0x10000, scoped, tag = 'input window, operand 2, single buffered']
    #allocation6 [shape = 's32[1]{0}', space=sflag, size = 0x4, scoped, tag = 'scoped memory for tpu_custom_call.1']
    #allocation7 [shape = 'u8[2048]{0}', space=vmem, size = 0x800, scoped, tag = 'output window, operand 0, single buffered']
    %8 = vsyncpa [#allocation3], 0
    %9 = vsyncpa [#allocation6], 0
    %10 = vsyncpa [#allocation4], 0
    // Predicated region
    $region2: #{tpu_custom_call.1} parent=1 // pred_check
      _
    $region3: #{tpu_custom_call.1} parent=1 // pred_check_branch
      %12 = sbr.rel (0) target = $region5
    $region4: #{tpu_custom_call.1} parent=1 // pred_region
      %s14 = ssub.s32 64, 64
      %15 = vsyncadd [#allocation3], %s14
      %s17 = sshll.u32 [#allocation2], 4
      %s18 = int_to_ptr.vmem [resolvable:$true] %s17
      %20 = dma.hbm_to_vmem [thread:$0]  %s0, 64, %s18, [#allocation3]
    $region5: #{tpu_custom_call.1} parent=1 // pred_fallthru
      _
    // Predicated region
    $region6: #{tpu_custom_call.1} parent=1 // pred_check
      _
    $region7: #{tpu_custom_call.1} parent=1 // pred_check_branch
      %22 = sbr.rel (0) target = $region9
    $region8: #{tpu_custom_call.1} parent=1 // pred_region
      _
    $region9: #{tpu_custom_call.1} parent=1 // pred_fallthru
      _
    // Predicated region
    $region10: #{tpu_custom_call.1} parent=1 // pred_check
      _
    $region11: #{tpu_custom_call.1} parent=1 // pred_check_branch
      %24 = sbr.rel (0) target = $region13
    $region12: #{tpu_custom_call.1} parent=1 // pred_region
      %s26 = ssub.s32 2048, 2048
      %27 = vsyncadd [#allocation6], %s26
      %s28 = sshll.u32 [#allocation5], 4
      %s29 = int_to_ptr.vmem [resolvable:$true] %s28
      %34 = dma.hbm_to_vmem [thread:$0]  %s2, 2048, %s29, [#allocation6], 128, 128, 8
    $region13: #{tpu_custom_call.1} parent=1 // pred_fallthru
      _
    // Predicated region
    $region14: #{tpu_custom_call.1} parent=1 // pred_check
      _
    $region15: #{tpu_custom_call.1} parent=1 // pred_check_branch
      %36 = sbr.rel (0) target = $region17
    $region16: #{tpu_custom_call.1} parent=1 // pred_region
      %37 = dma.done [#allocation3], 64
    $region17: #{tpu_custom_call.1} parent=1 // pred_fallthru
      _
    // Predicated region
    $region18: #{tpu_custom_call.1} parent=1 // pred_check
      _
    $region19: #{tpu_custom_call.1} parent=1 // pred_check_branch
      %39 = sbr.rel (0) target = $region21
    $region20: #{tpu_custom_call.1} parent=1 // pred_region
      %40 = dma.done [#allocation6], 2048
    $region21: #{tpu_custom_call.1} parent=1 // pred_fallthru
      _
    %v41 = vld [vmem:[#allocation2] sm:$0xf]
    %v42 = vmul.f32 %v41, %v41
    %v43 = vld [vmem:[#allocation5] sm:$0xff]
    %v44 = vld [vmem:[#allocation5 + $0x8] sm:$0xff]
    %v45 = vld [vmem:[#allocation5 + $0x10] sm:$0xff]
    %v46 = vld [vmem:[#allocation5 + $0x18] sm:$0xff]
    %v47 = vld [vmem:[#allocation5 + $0x20] sm:$0xff]
    %v48 = vld [vmem:[#allocation5 + $0x28] sm:$0xff]
    %v49 = vld [vmem:[#allocation5 + $0x30] sm:$0xff]
    %v50 = vld [vmem:[#allocation5 + $0x38] sm:$0xff]
    %v51 = vld [vmem:[#allocation5 + $0x40] sm:$0xff]
    %v52 = vld [vmem:[#allocation5 + $0x48] sm:$0xff]
    %v53 = vld [vmem:[#allocation5 + $0x50] sm:$0xff]
    %v54 = vld [vmem:[#allocation5 + $0x58] sm:$0xff]
    %v55 = vld [vmem:[#allocation5 + $0x60] sm:$0xff]
    %v56 = vld [vmem:[#allocation5 + $0x68] sm:$0xff]
    %v57 = vld [vmem:[#allocation5 + $0x70] sm:$0xff]
    %v58 = vld [vmem:[#allocation5 + $0x78] sm:$0xff]
    %59 = vmatprep.subr.mxu0 0.0
    %60 = vmatpush1.msra.mxu0 %v43
    %61 = vmatprep.subr.mxu0 0.0
    %62 = vmatpush1.msra.mxu0 %v44
    %63 = vmatprep.subr.mxu0 0.0
    %64 = vmatpush1.msra.mxu0 %v45
    %65 = vmatprep.subr.mxu0 0.0
    %66 = vmatpush1.msra.mxu0 %v46
    %67 = vmatprep.subr.mxu0 0.0
    %68 = vmatpush1.msra.mxu0 %v47
    %69 = vmatprep.subr.mxu0 0.0
    %70 = vmatpush1.msra.mxu0 %v48
    %71 = vmatprep.subr.mxu0 0.0
    %72 = vmatpush1.msra.mxu0 %v49
    %73 = vmatprep.subr.mxu0 0.0
    %74 = vmatpush1.msra.mxu0 %v50
    %75 = vmatprep.subr.mxu0 0.0
    %76 = vmatpush1.msra.mxu0 %v51
    %77 = vmatprep.subr.mxu0 0.0
    %78 = vmatpush1.msra.mxu0 %v52
    %79 = vmatprep.subr.mxu0 0.0
    %80 = vmatpush1.msra.mxu0 %v53
    %81 = vmatprep.subr.mxu0 0.0
    %82 = vmatpush1.msra.mxu0 %v54
    %83 = vmatprep.subr.mxu0 0.0
    %84 = vmatpush1.msra.mxu0 %v55
    %85 = vmatprep.subr.mxu0 0.0
    %86 = vmatpush1.msra.mxu0 %v56
    %87 = vmatprep.subr.mxu0 0.0
    %88 = vmatpush1.msra.mxu0 %v57
    %89 = vmatprep.subr.mxu0 0.0
    %90 = vmatpush1.msra.mxu0 %v58
    %91 = vmatprep.subr.mxu0 0.0
    %92 = vmatpush1.msra.mxu0 0.0
    %93 = vmatprep.subr.mxu0 0.0
    %94 = vmatpush1.msra.mxu0 0.0
    %95 = vmatprep.subr.mxu0 0.0
    %96 = vmatpush1.msra.mxu0 0.0
    %97 = vmatprep.subr.mxu0 0.0
    %98 = vmatpush1.msra.mxu0 0.0
    %99 = vmatprep.subr.mxu0 0.0
    %100 = vmatpush1.msra.mxu0 0.0
    %101 = vmatprep.subr.mxu0 0.0
    %102 = vmatpush1.msra.mxu0 0.0
    %103 = vmatprep.subr.mxu0 0.0
    %104 = vmatpush1.msra.mxu0 0.0
    %105 = vmatprep.subr.mxu0 0.0
    %106 = vmatpush1.msra.mxu0 0.0
    %107 = vmatprep.subr.mxu0 0.0
    %108 = vmatpush1.msra.mxu0 0.0
    %109 = vmatprep.subr.mxu0 0.0
    %110 = vmatpush1.msra.mxu0 0.0
    %111 = vmatprep.subr.mxu0 0.0
    %112 = vmatpush1.msra.mxu0 0.0
    %113 = vmatprep.subr.mxu0 0.0
    %114 = vmatpush1.msra.mxu0 0.0
    %115 = vmatprep.subr.mxu0 0.0
    %116 = vmatpush1.msra.mxu0 0.0
    %117 = vmatprep.subr.mxu0 0.0
    %118 = vmatpush1.msra.mxu0 0.0
    %119 = vmatprep.subr.mxu0 0.0
    %120 = vmatpush1.msra.mxu0 0.0
    %121 = vmatprep.subr.mxu0 0.0
    %122 = vmatpush1.msra.mxu0 0.0
    %123 = vmatprep.mubr.f32.mxu0 0.0
    %124 = vmatmul.mubr.f32.gmra.mrb[0].mxu0 %v42
    %v125 = vpop.f32.mrb[0].mxu0
    %v126 = vadd.f32 0.0, %v125
    %v127 = vpop.f32.mrb[0].mxu0
    %128 = vdwg.mxu0
    %v129 = vmul.f32 %v126, 0.03125
    %v130 = vadd.f32 %v129, 1e-06
    %v131 = vrsqrt.pop %v130
    %v132 = vmul.f32 %v41, %v131
    %v133 = vld [vmem:[%s1] sm:$0x1]
    %v135 = vlaneseq
    %v136 = vshrl.u32 %v135, 7
    %v137 = vsub.s32 0, %v136
    %v138 = vrot.slane %v133, %v137
    %v140 = vmul.f32 %v132, %v138
    %141 = vst [vmem:[#allocation7] sm:$0xf] %v140
    // Predicated region
    $region22: #{tpu_custom_call.1} parent=1 // pred_check
      _
    $region23: #{tpu_custom_call.1} parent=1 // pred_check_branch
      %143 = sbr.rel (0) target = $region25
    $region24: #{tpu_custom_call.1} parent=1 // pred_region
      %s145 = ssub.s32 64, 64
      %146 = vsyncadd [#allocation4], %s145
      %s148 = sshll.u32 [#allocation7], 4
      %s149 = int_to_ptr.vmem [resolvable:$true] %s148
      %151 = dma.vmem_to_hbm [thread:$0]  %s149, 64, %s3, [#allocation4]
    $region25: #{tpu_custom_call.1} parent=1 // pred_fallthru
      _
    // Predicated region
    $region26: #{tpu_custom_call.1} parent=1 // pred_check
      _
    $region27: #{tpu_custom_call.1} parent=1 // pred_check_branch
      %153 = sbr.rel (0) target = $region29
    $region28: #{tpu_custom_call.1} parent=1 // pred_region
      %154 = dma.done [#allocation4], 64
    $region29: #{tpu_custom_call.1} parent=1 // pred_fallthru
      _
    %155 = vsyncpa [#allocation3], 1
    %156 = vsyncpa [#allocation6], 1
    %157 = vsyncpa [#allocation4], 1

</llo_original>
